<compile_context>
chip_gen: v5e
topology: v5e:2x2
jax: 0.10.0
libtpu: 0.0.40
codegen_flags: <defaults>
</compile_context>

<pallas_src>
import functools
import math

import jax
import jax.numpy as jnp
from jax import lax
from jax.experimental import pallas as pl
from jax.experimental.pallas import tpu as pltpu


def _normalize_and_l1_sums(px, tx, pq, tq):
    """Shared f32 compute body: (sum|px - tx|, sum|normalize(pq) - tq|)."""
    # F.normalize(pred_q, p=2, dim=1): q / max(||q||, 1e-12)
    #   == q * rsqrt(max(||q||^2, 1e-24))     (rsqrt runs on the EUP slot)
    # Unrolled 4-term squared norm: 3 VPU adds, no XLU cross-lane reduce and
    # no keepdims broadcast (JAX does not CSE broadcast_in_dim).
    nsq = (pq[:, 0:1] * pq[:, 0:1] + pq[:, 1:2] * pq[:, 1:2]
           + pq[:, 2:3] * pq[:, 2:3] + pq[:, 3:4] * pq[:, 3:4])
    pq_n = pq * lax.rsqrt(jnp.maximum(nsq, 1e-24))

    sum_x = jnp.sum(jnp.abs(px - tx))
    sum_q = jnp.sum(jnp.abs(pq_n - tq))
    return sum_x, sum_q


def _pose_loss_kernel_static(px_ref, tx_ref, pq_ref, tq_ref, out_ref, *,
                             inv_nx, inv_nq, exp_neg_sx, sx, exp_neg_sq, sq):
    """learn_beta=False path: sx/sq and exp(-sx)/exp(-sq) are constants."""
    px = px_ref[...].astype(jnp.float32)   # in-kernel upcast (no wrapper cast)
    tx = tx_ref[...].astype(jnp.float32)
    pq = pq_ref[...].astype(jnp.float32)
    tq = tq_ref[...].astype(jnp.float32)

    sum_x, sum_q = _normalize_and_l1_sums(px, tx, pq, tq)
    loss_x = sum_x * inv_nx                # mean -> static scalar multiply
    loss_q = sum_q * inv_nq
    loss = exp_neg_sx * loss_x + sx + exp_neg_sq * loss_q + sq

    out_ref[0] = loss
    out_ref[1] = loss_x
    out_ref[2] = loss_q


def _pose_loss_kernel_dynamic(s_ref, px_ref, tx_ref, pq_ref, tq_ref, out_ref,
                              *, inv_nx, inv_nq):
    """learn_beta=True path: sx/sq arrive as a (2,) f32 SMEM scalar input."""
    px = px_ref[...].astype(jnp.float32)
    tx = tx_ref[...].astype(jnp.float32)
    pq = pq_ref[...].astype(jnp.float32)
    tq = tq_ref[...].astype(jnp.float32)

    sum_x, sum_q = _normalize_and_l1_sums(px, tx, pq, tq)
    loss_x = sum_x * inv_nx
    loss_q = sum_q * inv_nq

    sx = s_ref[0]
    sq = s_ref[1]
    loss = jnp.exp(-sx) * loss_x + sx + jnp.exp(-sq) * loss_q + sq

    out_ref[0] = loss
    out_ref[1] = loss_x
    out_ref[2] = loss_q


def pose_loss(pred_x, pred_q, target_x, target_q, sx=0.0, sq=0.0):
    """Pallas implementation of PoseLoss.forward.

    Returns (loss, loss_x, loss_q) as f32 scalars.
    If sx/sq are Python numbers (learn_beta=False), they are folded into the
    kernel as compile-time constants; otherwise they go through SMEM.
    """
    B, DX = pred_x.shape
    _, DQ = pred_q.shape
    inv_nx = 1.0 / float(B * DX)
    inv_nq = 1.0 / float(B * DQ)

    def vmem_spec(a):
        # full-array block (last two dims == array dims satisfies tiling rule)
        return pl.BlockSpec(a.shape, lambda: (0, 0), memory_space=pltpu.VMEM)

    smem_spec = pl.BlockSpec(memory_space=pltpu.SMEM)
    out_shape = jax.ShapeDtypeStruct((3,), jnp.float32)

    n_bytes = sum(int(a.size * a.dtype.itemsize)
                  for a in (pred_x, pred_q, target_x, target_q)) + 3 * 4
    cost = pl.CostEstimate(flops=int(B * 30),
                           transcendentals=int(B + 2),
                           bytes_accessed=int(n_bytes))

    static_beta = isinstance(sx, (int, float)) and isinstance(sq, (int, float))

    if static_beta:
        kern = functools.partial(
            _pose_loss_kernel_static,
            inv_nx=inv_nx, inv_nq=inv_nq,
            exp_neg_sx=math.exp(-float(sx)), sx=float(sx),
            exp_neg_sq=math.exp(-float(sq)), sq=float(sq))
        out = pl.pallas_call(
            kern,
            out_shape=out_shape,
            in_specs=[vmem_spec(pred_x), vmem_spec(target_x),
                      vmem_spec(pred_q), vmem_spec(target_q)],
            out_specs=smem_spec,
            cost_estimate=cost,
        )(pred_x, target_x, pred_q, target_q)
    else:
        s_arr = jnp.stack([jnp.asarray(sx, jnp.float32).reshape(()),
                           jnp.asarray(sq, jnp.float32).reshape(())])
        kern = functools.partial(_pose_loss_kernel_dynamic,
                                 inv_nx=inv_nx, inv_nq=inv_nq)
        out = pl.pallas_call(
            kern,
            out_shape=out_shape,
            in_specs=[smem_spec,
                      vmem_spec(pred_x), vmem_spec(target_x),
                      vmem_spec(pred_q), vmem_spec(target_q)],
            out_specs=smem_spec,
            cost_estimate=cost,
        )(s_arr, pred_x, target_x, pred_q, target_q)

    return out[0], out[1], out[2]


def pose_loss_ref(pred_x, pred_q, target_x, target_q, sx, sq):
    """Pure-JAX reference for validation."""
    norm = jnp.maximum(jnp.linalg.norm(pred_q, axis=1, keepdims=True), 1e-12)
    pq_n = pred_q / norm
    loss_x = jnp.mean(jnp.abs(pred_x - target_x))
    loss_q = jnp.mean(jnp.abs(pq_n - target_q))
    loss = jnp.exp(-sx) * loss_x + sx + jnp.exp(-sq) * loss_q + sq
    return loss, loss_x, loss_q


if __name__ == "__main__":
    # PoseLoss(device, sx=0.0, sq=0.0, learn_beta=False): the nn.Parameter
    # assignments in the ctor mean sx = 0.0, sq = 0.0 at forward time.
    sx_param = 0.0
    sq_param = 0.0

    key = jax.random.PRNGKey(0)
    k1, k2, k3, k4 = jax.random.split(key, 4)
    B = 8
    pred_x = jax.random.normal(k1, (B, 3), jnp.float32)      # translation
    pred_q = jax.random.normal(k2, (B, 4), jnp.float32)      # quaternion
    target_x = jax.random.normal(k3, (B, 3), jnp.float32)
    target_q = jax.random.normal(k4, (B, 4), jnp.float32)
    # target quaternions are typically unit-norm; normalize for realism
    target_q = target_q / jnp.linalg.norm(target_q, axis=1, keepdims=True)

    # --- static-beta path (matches the module's learn_beta=False default) ---
    loss, loss_x, loss_q = pose_loss(pred_x, pred_q, target_x, target_q,
                                     sx_param, sq_param)
    jax.block_until_ready((loss, loss_x, loss_q))
    r_loss, r_lx, r_lq = pose_loss_ref(pred_x, pred_q, target_x, target_q,
                                       sx_param, sq_param)
    assert jnp.allclose(loss, r_loss, atol=1e-5), (loss, r_loss)
    assert jnp.allclose(loss_x, r_lx, atol=1e-5), (loss_x, r_lx)
    assert jnp.allclose(loss_q, r_lq, atol=1e-5), (loss_q, r_lq)

    # --- learnable-beta path (sx/sq traced -> SMEM scalar input) ---
    sx_t = jnp.asarray(0.3, jnp.float32)
    sq_t = jnp.asarray(-1.25, jnp.float32)
    loss2, lx2, lq2 = pose_loss(pred_x, pred_q, target_x, target_q, sx_t, sq_t)
    jax.block_until_ready((loss2, lx2, lq2))
    r2_loss, r2_lx, r2_lq = pose_loss_ref(pred_x, pred_q, target_x, target_q,
                                          sx_t, sq_t)
    assert jnp.allclose(loss2, r2_loss, atol=1e-5), (loss2, r2_loss)
    assert jnp.allclose(lx2, r2_lx, atol=1e-5), (lx2, r2_lx)
    assert jnp.allclose(lq2, r2_lq, atol=1e-5), (lq2, r2_lq)

    print("KERNEL_OK")
</pallas_src>

<mosaic_0001>
module attributes {stable_mosaic.version = 11 : i64} {
  func.func @_pose_loss_kernel_static(%arg0: memref<8x3xf32, #tpu.memory_space<vmem>>, %arg1: memref<8x3xf32, #tpu.memory_space<vmem>>, %arg2: memref<8x4xf32, #tpu.memory_space<vmem>>, %arg3: memref<8x4xf32, #tpu.memory_space<vmem>>, %arg4: memref<3xf32, #tpu.memory_space<smem>>) attributes {dimension_semantics = [], scalar_prefetch = 0 : i64, scratch_operands = 0 : i64, tpu.core_type = #tpu.core_type<tc>} {
    %c0 = arith.constant 0 : index
    %c0_0 = arith.constant 0 : index
    %0 = vector.load %arg0[%c0, %c0_0] : memref<8x3xf32, #tpu.memory_space<vmem>>, vector<8x3xf32>
    %c0_1 = arith.constant 0 : index
    %c0_2 = arith.constant 0 : index
    %1 = vector.load %arg1[%c0_1, %c0_2] : memref<8x3xf32, #tpu.memory_space<vmem>>, vector<8x3xf32>
    %c0_3 = arith.constant 0 : index
    %c0_4 = arith.constant 0 : index
    %2 = vector.load %arg2[%c0_3, %c0_4] : memref<8x4xf32, #tpu.memory_space<vmem>>, vector<8x4xf32>
    %c0_5 = arith.constant 0 : index
    %c0_6 = arith.constant 0 : index
    %3 = vector.load %arg3[%c0_5, %c0_6] : memref<8x4xf32, #tpu.memory_space<vmem>>, vector<8x4xf32>
    %4 = vector.extract_strided_slice %2 {offsets = [0, 0], sizes = [8, 1], strides = [1, 1]} : vector<8x4xf32> to vector<8x1xf32>
    %5 = vector.extract_strided_slice %2 {offsets = [0, 0], sizes = [8, 1], strides = [1, 1]} : vector<8x4xf32> to vector<8x1xf32>
    %6 = arith.mulf %4, %5 : vector<8x1xf32>
    %7 = vector.extract_strided_slice %2 {offsets = [0, 1], sizes = [8, 1], strides = [1, 1]} : vector<8x4xf32> to vector<8x1xf32>
    %8 = vector.extract_strided_slice %2 {offsets = [0, 1], sizes = [8, 1], strides = [1, 1]} : vector<8x4xf32> to vector<8x1xf32>
    %9 = arith.mulf %7, %8 : vector<8x1xf32>
    %10 = arith.addf %6, %9 : vector<8x1xf32>
    %11 = vector.extract_strided_slice %2 {offsets = [0, 2], sizes = [8, 1], strides = [1, 1]} : vector<8x4xf32> to vector<8x1xf32>
    %12 = vector.extract_strided_slice %2 {offsets = [0, 2], sizes = [8, 1], strides = [1, 1]} : vector<8x4xf32> to vector<8x1xf32>
    %13 = arith.mulf %11, %12 : vector<8x1xf32>
    %14 = arith.addf %10, %13 : vector<8x1xf32>
    %15 = vector.extract_strided_slice %2 {offsets = [0, 3], sizes = [8, 1], strides = [1, 1]} : vector<8x4xf32> to vector<8x1xf32>
    %16 = vector.extract_strided_slice %2 {offsets = [0, 3], sizes = [8, 1], strides = [1, 1]} : vector<8x4xf32> to vector<8x1xf32>
    %17 = arith.mulf %15, %16 : vector<8x1xf32>
    %18 = arith.addf %14, %17 : vector<8x1xf32>
    %cst = arith.constant 1.000000e-24 : f32
    %19 = vector.broadcast %cst : f32 to vector<8x1xf32>
    %20 = arith.maximumf %18, %19 : vector<8x1xf32>
    %21 = math.rsqrt %20 : vector<8x1xf32>
    %22 = vector.broadcast %21 : vector<8x1xf32> to vector<8x4xf32>
    %23 = arith.mulf %2, %22 : vector<8x4xf32>
    %24 = arith.subf %0, %1 : vector<8x3xf32>
    %25 = math.absf %24 : vector<8x3xf32>
    %26 = vector.shape_cast %25 : vector<8x3xf32> to vector<1x8x3xf32>
    %cst_7 = arith.constant dense<0.000000e+00> : vector<1xf32>
    %27 = vector.multi_reduction <add>, %26, %cst_7 [1, 2] : vector<1x8x3xf32> to vector<1xf32>
    %28 = vector.shape_cast %27 : vector<1xf32> to vector<1x1x1xf32>
    %29 = vector.extract %28[0, 0, 0] : f32 from vector<1x1x1xf32>
    %30 = arith.subf %23, %3 : vector<8x4xf32>
    %31 = math.absf %30 : vector<8x4xf32>
    %32 = vector.shape_cast %31 : vector<8x4xf32> to vector<1x8x4xf32>
    %cst_8 = arith.constant dense<0.000000e+00> : vector<1xf32>
    %33 = vector.multi_reduction <add>, %32, %cst_8 [1, 2] : vector<1x8x4xf32> to vector<1xf32>
    %34 = vector.shape_cast %33 : vector<1xf32> to vector<1x1x1xf32>
    %35 = vector.extract %34[0, 0, 0] : f32 from vector<1x1x1xf32>
    %cst_9 = arith.constant 0.0416666679 : f32
    %36 = arith.mulf %29, %cst_9 : f32
    %cst_10 = arith.constant 3.125000e-02 : f32
    %37 = arith.mulf %35, %cst_10 : f32
    %cst_11 = arith.constant 1.000000e+00 : f32
    %38 = arith.mulf %cst_11, %36 : f32
    %cst_12 = arith.constant 0.000000e+00 : f32
    %39 = arith.addf %38, %cst_12 : f32
    %cst_13 = arith.constant 1.000000e+00 : f32
    %40 = arith.mulf %cst_13, %37 : f32
    %41 = arith.addf %39, %40 : f32
    %cst_14 = arith.constant 0.000000e+00 : f32
    %42 = arith.addf %41, %cst_14 : f32
    %c0_15 = arith.constant 0 : index
    %43 = memref.load %arg4[%c0_15] : memref<3xf32, #tpu.memory_space<smem>>
    memref.store %42, %arg4[%c0_15] : memref<3xf32, #tpu.memory_space<smem>>
    %c1 = arith.constant 1 : index
    %44 = memref.load %arg4[%c1] : memref<3xf32, #tpu.memory_space<smem>>
    memref.store %36, %arg4[%c1] : memref<3xf32, #tpu.memory_space<smem>>
    %c2 = arith.constant 2 : index
    %45 = memref.load %arg4[%c2] : memref<3xf32, #tpu.memory_space<smem>>
    memref.store %37, %arg4[%c2] : memref<3xf32, #tpu.memory_space<smem>>
    return
  }
}

</mosaic_0001>

<llo_original>
// kernel: tpu_custom_call.1
$region0: #{tpu_custom_call.1}
  #allocation0 [shape = 'u32[]', space=smem, size = 0x4, offset = 0x4, fixed_abs, tag = 'smem constant byte address 0x4 - core index']
  #allocation1 [shape = 'u32[72,128]{1,0:T(1,128)}', space=vmem, size = 0x9000, scoped, tag = 'internal scratch']
  %s0 = inlined_call_operand.vmem [shape: f32[8,3], index: 0, kind: input, shape index: {}]
  %s1 = inlined_call_operand.vmem [shape: f32[8,3], index: 1, kind: input, shape index: {}]
  %s2 = inlined_call_operand.vmem [shape: f32[8,4], index: 2, kind: input, shape index: {}]
  %s3 = inlined_call_operand.vmem [shape: f32[8,4], index: 3, kind: input, shape index: {}]
  %s4 = inlined_call_operand.hbm [shape: f32[3], index: 4, kind: output, shape index: {}]
  %s5 = sld [smem:[#allocation0]]
  $region26: #{tpu_custom_call.1} parent=0
    _
  %s7 = ssub.s32 1, %s5
  %s8 = scalar_select 0, %s7, %s5
  $region1: #{tpu_custom_call.1} parent=0
    #allocation2 [shape = 'u8[512]{0}', space=smem, size = 0x200, scoped, tag = 'output window, operand 0, single buffered']
    #allocation3 [shape = 's32[1]{0}', space=sflag, size = 0x4, scoped, tag = 'scoped memory for tpu_custom_call.1']
    %9 = vsyncpa [#allocation3], 0
    // Predicated region
    $region2: #{tpu_custom_call.1} parent=1 // pred_check
      _
    $region3: #{tpu_custom_call.1} parent=1 // pred_check_branch
      %11 = sbr.rel (0) target = $region5
    $region4: #{tpu_custom_call.1} parent=1 // pred_region
      _
    $region5: #{tpu_custom_call.1} parent=1 // pred_fallthru
      _
    // Predicated region
    $region6: #{tpu_custom_call.1} parent=1 // pred_check
      _
    $region7: #{tpu_custom_call.1} parent=1 // pred_check_branch
      %13 = sbr.rel (0) target = $region9
    $region8: #{tpu_custom_call.1} parent=1 // pred_region
      _
    $region9: #{tpu_custom_call.1} parent=1 // pred_fallthru
      _
    // Predicated region
    $region10: #{tpu_custom_call.1} parent=1 // pred_check
      _
    $region11: #{tpu_custom_call.1} parent=1 // pred_check_branch
      %15 = sbr.rel (0) target = $region13
    $region12: #{tpu_custom_call.1} parent=1 // pred_region
      _
    $region13: #{tpu_custom_call.1} parent=1 // pred_fallthru
      _
    // Predicated region
    $region14: #{tpu_custom_call.1} parent=1 // pred_check
      _
    $region15: #{tpu_custom_call.1} parent=1 // pred_check_branch
      %17 = sbr.rel (0) target = $region17
    $region16: #{tpu_custom_call.1} parent=1 // pred_region
      _
    $region17: #{tpu_custom_call.1} parent=1 // pred_fallthru
      _
    %v18 = vld [vmem:[%s0] sm:$0xff]
    %v19 = vld [vmem:[%s1] sm:$0xff]
    %v20 = vld [vmem:[%s2] sm:$0xff]
    %v21 = vld [vmem:[%s3] sm:$0xff]
    %v22 = vmul.f32 %v20, %v20
    %24 = vrot.lane.b32.xlu0 %v22, 127
    %v25 = vpop.permute.xlu0 %24
    %v27 = vadd.f32 %v22, %v25
    %28 = vrot.lane.b32.xlu0 %v22, 126
    %v29 = vpop.permute.xlu0 %28
    %v31 = vadd.f32 %v27, %v29
    %32 = vrot.lane.b32.xlu0 %v22, 125
    %v33 = vpop.permute.xlu0 %32
    %v35 = vadd.f32 %v31, %v33
    %v36 = vmax.f32 %v35, 1e-24
    %v37 = vrsqrt.pop %v36
    %v38 = vmul.f32 %v37, %v36
    %v39 = vmul.f32 %v38, %v37
    %v40 = vmul.f32 0.5, %v39
    %v41 = vsub.f32 1.5, %v40
    %v42 = vmul.f32 %v37, %v41
    %vm43 = vweird.f32 %v36
    %vm44 = vweird.f32 %v37
    %vm45 = vmor %vm43, %vm44
    %v46 = vsel %vm45, %v37, %v42
    %48 = vset.pattern.permute.xlu0 0
    %49 = vperm.xlu0 %48, %v46
    %v50 = vpop.permute.xlu0 %49
    %v52 = vmul.f32 %v20, %v50
    %v53 = vsub.f32 %v18, %v19
    %v54 = vand.u32 2147483647, %v53
    %vm55 = vcmask 23552
    %v56 = vsel %vm55, %v54, 0.0
    %57 = vadd.xlane.f32.xlu0 %v56
    %v58 = vpop.xlane.xlu0 %57
    %v59 = vrot.slane %v58, 4
    %v60 = vadd.f32 %v58, %v59
    %v61 = vrot.slane %v60, 2
    %v62 = vadd.f32 %v60, %v61
    %v63 = vrot.slane %v62, 1
    %v64 = vadd.f32 %v62, %v63
    %s65 = vtos %v64
    %v66 = vsub.f32 %v52, %v21
    %v67 = vand.u32 2147483647, %v66
    %vm68 = vcmask 31744
    %v69 = vsel %vm68, %v67, 0.0
    %70 = vadd.xlane.f32.xlu0 %v69
    %v71 = vpop.xlane.xlu0 %70
    %v72 = vrot.slane %v71, 4
    %v73 = vadd.f32 %v71, %v72
    %v74 = vrot.slane %v73, 2
    %v75 = vadd.f32 %v73, %v74
    %v76 = vrot.slane %v75, 1
    %v77 = vadd.f32 %v75, %v76
    %s78 = vtos %v77
    %s79 = smul.f32 %s65, 0.041666668
    %s80 = smul.f32 %s78, 0.03125
    %s81 = sadd.f32 %s79, 0.0
    %s82 = sadd.f32 %s81, %s80
    %s83 = sadd.f32 %s82, 0.0
    %s84 = scalar_lea.smem [#allocation2], 0
    %85 = sst [smem:[%s84]] %s83
    %s86 = scalar_lea.smem [#allocation2], 1
    %87 = sst [smem:[%s86]] %s79
    %s88 = scalar_lea.smem [#allocation2], 2
    %89 = sst [smem:[%s88]] %s80
    // Predicated region
    $region18: #{tpu_custom_call.1} parent=1 // pred_check
      _
    $region19: #{tpu_custom_call.1} parent=1 // pred_check_branch
      %91 = sbr.rel (0) target = $region21
    $region20: #{tpu_custom_call.1} parent=1 // pred_region
      %93 = vsyncadd [#allocation3], 0
      %s95 = sshll.u32 %s4, 4
      %s96 = int_to_ptr.hbm [resolvable:$true] %s95
      %98 = dma.smem_to_hbm [#allocation2], 16, %s96, [#allocation3]
    $region21: #{tpu_custom_call.1} parent=1 // pred_fallthru
      _
    // Predicated region
    $region22: #{tpu_custom_call.1} parent=1 // pred_check
      _
    $region23: #{tpu_custom_call.1} parent=1 // pred_check_branch
      %100 = sbr.rel (0) target = $region25
    $region24: #{tpu_custom_call.1} parent=1 // pred_region
      %102 = dma.done [#allocation3], 16
    $region25: #{tpu_custom_call.1} parent=1 // pred_fallthru
      _
    %103 = sfence
    %104 = vsyncpa [#allocation3], 1

</llo_original>
